<compile_context>
chip_gen: v5e
topology: v5e:2x2
jax: 0.10.0
libtpu: 0.0.40
codegen_flags: <defaults>
</compile_context>

<pallas_src>
import functools

import numpy as np
import jax
import jax.numpy as jnp
from jax.experimental import pallas as pl
from jax.experimental.pallas import tpu as pltpu

_LANE = 128
_SUB = 8
_MAX_ROW_TILE = 256   # 256-row tiles keep the MXU busy; 256x128 f32 block = 128 KB


def _ceil_to(x, m):
    return ((x + m - 1) // m) * m


def _row_tile(n, max_tile=_MAX_ROW_TILE):
    n8 = max(_ceil_to(max(n, 1), _SUB), _SUB)
    tm = min(max_tile, n8)
    return tm, _ceil_to(n8, tm)


def _pad2(a, rows, cols, fill=0.0, dtype=jnp.float32):
    a = jnp.asarray(a, jnp.float32)
    out = jnp.full((rows, cols), fill, jnp.float32)
    out = out.at[: a.shape[0], : a.shape[1]].set(a)
    return out.astype(dtype)


# ----------------------------------------------------------------------------
# Kernel 1: generic fused two-layer MLP   out = relu(x @ W1 + b1) @ W2 + b2
#   weights are bf16, activations cast to bf16 at the MXU, f32 accumulation.
# ----------------------------------------------------------------------------
def _mlp2_kernel(x_ref, w1_ref, b1_ref, w2_ref, b2_ref, o_ref):
    x = x_ref[...].astype(jnp.bfloat16)
    h = jnp.dot(x, w1_ref[...], preferred_element_type=jnp.float32) + b1_ref[...]
    h = jnp.maximum(h, 0.0)
    o = jnp.dot(h.astype(jnp.bfloat16), w2_ref[...],
                preferred_element_type=jnp.float32) + b2_ref[...]
    o_ref[...] = o


def _mlp2_specs(tm):
    return [
        pl.BlockSpec((tm, _LANE), lambda i: (i, 0)),
        pl.BlockSpec((_LANE, _LANE), lambda i: (0, 0)),
        pl.BlockSpec((1, _LANE), lambda i: (0, 0)),
        pl.BlockSpec((_LANE, _LANE), lambda i: (0, 0)),
        pl.BlockSpec((1, _LANE), lambda i: (0, 0)),
    ]


def mlp2(x, params, fout):
    """x: (N, Fin) -> (N, fout); two-layer ReLU MLP on the MXU (bf16 weights)."""
    w1p, b1p, w2p, b2p = params
    n = x.shape[0]
    tm, n_p = _row_tile(n)
    xp = _pad2(x, n_p, _LANE)
    out = pl.pallas_call(
        _mlp2_kernel,
        out_shape=jax.ShapeDtypeStruct((n_p, _LANE), jnp.float32),
        grid=(n_p // tm,),
        in_specs=_mlp2_specs(tm),
        out_specs=pl.BlockSpec((tm, _LANE), lambda i: (i, 0)),
        compiler_params=pltpu.CompilerParams(dimension_semantics=("parallel",)),
    )(xp, w1p, b1p, w2p, b2p)
    return out[:n, :fout]


# ----------------------------------------------------------------------------
# Kernel 2: fused UResNet-surrogate MLP + ghost/seg argmax epilogue.
#   Single lane-dense (rows, 128) output slab:
#     cols [0, C)      : segmentation logits
#     cols [C, C+2)    : ghost logits
#     col   C+2        : non-ghost mask (ghost argmax == 0)
#     col   C+3        : segmentation argmax label
# ----------------------------------------------------------------------------
def _uresnet_argmax_kernel(x_ref, w1_ref, b1_ref, w2_ref, b2_ref, o_ref,
                           *, num_classes):
    x = x_ref[...].astype(jnp.bfloat16)
    h = jnp.maximum(
        jnp.dot(x, w1_ref[...], preferred_element_type=jnp.float32) + b1_ref[...],
        0.0)
    logits = jnp.dot(h.astype(jnp.bfloat16), w2_ref[...],
                     preferred_element_type=jnp.float32) + b2_ref[...]

    c = num_classes
    neg = jnp.float32(-3.0e38)
    lane = jax.lax.broadcasted_iota(jnp.int32, logits.shape, 1)

    # segmentation argmax over the first C lanes (first index wins on ties)
    seg_vals = jnp.where(lane < c, logits, neg)
    maxv = jnp.max(seg_vals, axis=1, keepdims=True)
    cand = jnp.where(seg_vals >= maxv, lane, jnp.int32(logits.shape[1]))
    seg_idx = jnp.min(cand, axis=1, keepdims=True).astype(jnp.float32)

    # ghost argmax == 0  <=>  logits[:, C] >= logits[:, C+1]
    ghost0 = jnp.max(jnp.where(lane == c, logits, neg), axis=1, keepdims=True)
    ghost1 = jnp.max(jnp.where(lane == c + 1, logits, neg), axis=1, keepdims=True)
    mask = (ghost0 >= ghost1).astype(jnp.float32)

    # pack mask / label into otherwise-zero padding lanes (lane-dense store)
    extra = (jnp.where(lane == c + 2, mask, 0.0)
             + jnp.where(lane == c + 3, seg_idx, 0.0))
    o_ref[...] = logits + extra


def uresnet_fused(x, params, num_classes):
    w1p, b1p, w2p, b2p = params
    n = x.shape[0]
    tm, n_p = _row_tile(n)
    xp = _pad2(x, n_p, _LANE)
    kern = functools.partial(_uresnet_argmax_kernel, num_classes=num_classes)
    out = pl.pallas_call(
        kern,
        out_shape=jax.ShapeDtypeStruct((n_p, _LANE), jnp.float32),
        grid=(n_p // tm,),
        in_specs=_mlp2_specs(tm),
        out_specs=pl.BlockSpec((tm, _LANE), lambda i: (i, 0)),
        compiler_params=pltpu.CompilerParams(dimension_semantics=("parallel",)),
    )(xp, w1p, b1p, w2p, b2p)
    return out[:n]


# ----------------------------------------------------------------------------
# Kernel 3: segment mean-pooling without a host-built dense one-hot matrix.
#   ids2 (2, K): up to two segment ids per column (-1 = none); the one-hot
#   block is built in VMEM from the id row, contraction axis K is tiled with
#   a VMEM f32 accumulator.  A "ones" column in feat carries the counts.
# ----------------------------------------------------------------------------
def _seg_mean_kernel(ids_ref, feat_ref, out_ref, acc_ref, *, tm_rows, cnt_col):
    kk = pl.program_id(1)

    @pl.when(kk == 0)
    def _():
        acc_ref[...] = jnp.zeros_like(acc_ref)

    ids = ids_ref[...]                                   # (2, TK) int32
    tk = ids.shape[1]
    row0 = pl.program_id(0) * tm_rows
    rows = jax.lax.broadcasted_iota(jnp.int32, (tm_rows, tk), 0) + row0
    oh = ((ids[0:1, :] == rows).astype(jnp.float32)
          + (ids[1:2, :] == rows).astype(jnp.float32))   # (TM, TK) on-the-fly one-hot
    acc_ref[...] += jnp.dot(oh, feat_ref[...], preferred_element_type=jnp.float32)

    @pl.when(kk == pl.num_programs(1) - 1)
    def _():
        acc = acc_ref[...]
        lane = jax.lax.broadcasted_iota(jnp.int32, acc.shape, 1)
        cnt = jnp.max(jnp.where(lane == cnt_col, acc, 0.0), axis=1, keepdims=True)
        out_ref[...] = acc / jnp.maximum(cnt, 1.0)


def mean_pool_by_ids(ids2, feat, num_rows, fout):
    """ids2: (2, K) int32 segment ids (-1 = no segment); feat: (K, fout) f32.
    Returns (num_rows, fout) per-segment means (count clipped to >= 1)."""
    k = feat.shape[0]
    tk = min(512, max(_ceil_to(max(k, 1), _LANE), _LANE))
    k_p = _ceil_to(max(k, 1), tk)
    tm_rows = min(128, max(_ceil_to(max(num_rows, 1), _SUB), _SUB))
    m_p = _ceil_to(max(num_rows, 1), tm_rows)

    ids_p = jnp.full((2, k_p), -1, jnp.int32)
    ids_p = ids_p.at[:, :k].set(jnp.asarray(ids2, jnp.int32))
    fp = _pad2(feat, k_p, _LANE)              # pooling stays f32 (coordinates)
    fp = fp.at[:k, fout].set(1.0)             # count column

    kern = functools.partial(_seg_mean_kernel, tm_rows=tm_rows, cnt_col=fout)
    out = pl.pallas_call(
        kern,
        out_shape=jax.ShapeDtypeStruct((m_p, _LANE), jnp.float32),
        grid=(m_p // tm_rows, k_p // tk),
        in_specs=[
            pl.BlockSpec((2, tk), lambda i, kk: (0, kk)),
            pl.BlockSpec((tk, _LANE), lambda i, kk: (kk, 0)),
        ],
        out_specs=pl.BlockSpec((tm_rows, _LANE), lambda i, kk: (i, 0)),
        scratch_shapes=[pltpu.VMEM((tm_rows, _LANE), jnp.float32)],
        compiler_params=pltpu.CompilerParams(
            dimension_semantics=("parallel", "arbitrary")),
    )(ids_p, fp)
    return out[:num_rows, :fout]


# ----------------------------------------------------------------------------
# Kernel 4: fused edge-encoder MLP + edge-model MLP over the same edge rows.
#   Input layout (lanes): xi [0,16), xj [16,32), |xi-xj| [32,48), zeros after.
#   The edge-model first layer is split into two matmuls (one on the input
#   slab, one on the freshly computed edge features) to avoid in-kernel
#   lane concatenation.  Outputs: edge_feats slab + edge_pred slab.
# ----------------------------------------------------------------------------
def _edge_fused_kernel(x_ref, ew1_ref, eb1_ref, ew2_ref, eb2_ref,
                       mw1x_ref, mw1e_ref, mb1_ref, mw2_ref, mb2_ref,
                       ef_ref, ep_ref):
    x = x_ref[...]
    xb = x.astype(jnp.bfloat16)
    # edge encoder
    h = jnp.maximum(
        jnp.dot(xb, ew1_ref[...], preferred_element_type=jnp.float32) + eb1_ref[...],
        0.0)
    ef = jnp.dot(h.astype(jnp.bfloat16), ew2_ref[...],
                 preferred_element_type=jnp.float32) + eb2_ref[...]
    ef_ref[...] = ef
    # edge model on [xi, xj, edge_feats] via split weights (ef stays in VMEM)
    hm = (jnp.dot(xb, mw1x_ref[...], preferred_element_type=jnp.float32)
          + jnp.dot(ef.astype(jnp.bfloat16), mw1e_ref[...],
                    preferred_element_type=jnp.float32)
          + mb1_ref[...])
    hm = jnp.maximum(hm, 0.0)
    ep_ref[...] = jnp.dot(hm.astype(jnp.bfloat16), mw2_ref[...],
                          preferred_element_type=jnp.float32) + mb2_ref[...]


def edge_fused(edge_raw, params, edge_dim):
    (ew1, eb1, ew2, eb2, mw1x, mw1e, mb1, mw2, mb2) = params
    n = edge_raw.shape[0]
    tm, n_p = _row_tile(n)
    xp = _pad2(edge_raw, n_p, _LANE)
    wspec = pl.BlockSpec((_LANE, _LANE), lambda i: (0, 0))
    bspec = pl.BlockSpec((1, _LANE), lambda i: (0, 0))
    ef, ep = pl.pallas_call(
        _edge_fused_kernel,
        out_shape=(jax.ShapeDtypeStruct((n_p, _LANE), jnp.float32),
                   jax.ShapeDtypeStruct((n_p, _LANE), jnp.float32)),
        grid=(n_p // tm,),
        in_specs=[pl.BlockSpec((tm, _LANE), lambda i: (i, 0)),
                  wspec, bspec, wspec, bspec,
                  wspec, wspec, bspec, wspec, bspec],
        out_specs=(pl.BlockSpec((tm, _LANE), lambda i: (i, 0)),
                   pl.BlockSpec((tm, _LANE), lambda i: (i, 0))),
        compiler_params=pltpu.CompilerParams(dimension_semantics=("parallel",)),
    )(xp, ew1, eb1, ew2, eb2, mw1x, mw1e, mb1, mw2, mb2)
    return ef[:n, :edge_dim], ep[:n, :2]


# ----------------------------------------------------------------------------
# Deterministic parameter init
# ----------------------------------------------------------------------------
def _init_linear(key, fin, fout, scale=0.1):
    kw, kb = jax.random.split(key)
    w = scale * jax.random.normal(kw, (fin, fout), jnp.float32)
    b = scale * jax.random.normal(kb, (fout,), jnp.float32)
    return w, b


def _pack_mlp(w1, b1, w2, b2):
    """Pre-pad an MLP's parameters once: bf16 weights, f32 biases."""
    return (_pad2(w1, _LANE, _LANE, dtype=jnp.bfloat16),
            _pad2(jnp.reshape(b1, (1, -1)), 1, _LANE),
            _pad2(w2, _LANE, _LANE, dtype=jnp.bfloat16),
            _pad2(jnp.reshape(b2, (1, -1)), 1, _LANE))


class GhostClustFullGNN:
    """Deghosting + GNN clustering (ghost_cluster_full_gnn) — Pallas version."""

    NUM_CLASSES = 5   # semantic classes
    HIDDEN = 32
    NODE_DIM = 16
    EDGE_DIM = 16

    def __init__(self, key, features=1):
        self.features = features
        ks = jax.random.split(key, 10)
        C, H, ND, ED = self.NUM_CLASSES, self.HIDDEN, self.NODE_DIM, self.EDGE_DIM
        # "uresnet_lonely" surrogate: per-point MLP with seg (C) + ghost (2) heads
        # TODO(synk): the real UResNet is a sparse (MinkowskiEngine) U-Net; no clean
        # Pallas equivalent — replaced by a dense per-point MLP with identical outputs.
        u_w1, u_b1 = _init_linear(ks[0], 4, H)
        u_w2, u_b2 = _init_linear(ks[1], H, C + 2)
        self.u_params = _pack_mlp(u_w1, u_b1, u_w2, u_b2)
        # "chain" (grappa GNN): node encoder (mean coords/value + size -> ND)
        ne_w1, ne_b1 = _init_linear(ks[2], 5, H)
        ne_w2, ne_b2 = _init_linear(ks[3], H, ND)
        self.ne_params = _pack_mlp(ne_w1, ne_b1, ne_w2, ne_b2)
        # edge encoder: [x_i, x_j, |x_i-x_j|] -> ED
        ee_w1, ee_b1 = _init_linear(ks[4], 3 * ND, H)
        ee_w2, ee_b2 = _init_linear(ks[5], H, ED)
        # edge model -> 2-channel edge prediction (fused with edge encoder)
        em_w1, em_b1 = _init_linear(ks[6], 2 * ND + ED, H)
        em_w2, em_b2 = _init_linear(ks[7], H, 2)
        # split em_w1: rows for [xi, xj] act on the input slab (lanes 0..2*ND),
        # rows for edge_feats act on the encoder output (lanes 0..ED).
        self.edge_params = (
            _pad2(ee_w1, _LANE, _LANE, dtype=jnp.bfloat16),
            _pad2(jnp.reshape(ee_b1, (1, -1)), 1, _LANE),
            _pad2(ee_w2, _LANE, _LANE, dtype=jnp.bfloat16),
            _pad2(jnp.reshape(ee_b2, (1, -1)), 1, _LANE),
            _pad2(em_w1[: 2 * ND], _LANE, _LANE, dtype=jnp.bfloat16),
            _pad2(em_w1[2 * ND:], _LANE, _LANE, dtype=jnp.bfloat16),
            _pad2(jnp.reshape(em_b1, (1, -1)), 1, _LANE),
            _pad2(em_w2, _LANE, _LANE, dtype=jnp.bfloat16),
            _pad2(jnp.reshape(em_b2, (1, -1)), 1, _LANE),
        )
        # node model -> 2-channel node prediction
        nm_w1, nm_b1 = _init_linear(ks[8], ND + ED, H)
        nm_w2, nm_b2 = _init_linear(ks[9], H, 2)
        self.nm_params = _pack_mlp(nm_w1, nm_b1, nm_w2, nm_b2)

    # ---- GNN ("chain") ----
    def _chain(self, point_cloud, kept_idx, kept_batch, kept_label):
        m = kept_idx.shape[0]
        ND, ED = self.NODE_DIM, self.EDGE_DIM

        # form clusters from (batch id, semantic label) -- dynamic-shape host glue
        keys = kept_batch.astype(np.int64) * 1000 + kept_label.astype(np.int64)
        uniq, inv = np.unique(keys, return_inverse=True)
        n_clust = len(uniq)
        clusts = [np.where(inv == ci)[0] for ci in range(n_clust)]
        batch_of = (uniq // 1000).astype(np.int64)
        counts = np.bincount(inv, minlength=n_clust)

        # per-cluster mean pooling of voxel features (segment-mean Pallas kernel,
        # no dense one-hot materialized)
        vox_feat = jnp.take(point_cloud, jnp.asarray(kept_idx, jnp.int32),
                            axis=0)[:, jnp.array([0, 1, 2, 4])]         # (K, 4)
        ids2 = np.full((2, m), -1, np.int32)
        ids2[0, :] = inv.astype(np.int32)
        pooled = mean_pool_by_ids(ids2, vox_feat, n_clust, 4)            # (C, 4)
        sizes = jnp.asarray(np.log1p(counts)[:, None], jnp.float32)      # (C, 1)
        node_raw = jnp.concatenate([pooled, sizes], axis=1)              # (C, 5)
        node_feats = mlp2(node_raw, self.ne_params, ND)                  # (C, ND)

        # complete graph within each batch -- dynamic-shape host glue
        edge_chunks = []
        for b in np.unique(batch_of):
            ids = np.where(batch_of == b)[0]
            if len(ids) > 1:
                iu, ju = np.triu_indices(len(ids), k=1)
                edge_chunks.append(np.stack([ids[iu], ids[ju]], axis=1))
        if edge_chunks:
            edge_index = np.concatenate(edge_chunks, axis=0).astype(np.int64)
        else:
            edge_index = np.zeros((0, 2), np.int64)
        n_edge = edge_index.shape[0]

        if n_edge == 0:
            edge_pred = jnp.zeros((0, 2), jnp.float32)
            agg = jnp.zeros((n_clust, ED), jnp.float32)
        else:
            ei = edge_index.astype(np.int32)
            xi = jnp.take(node_feats, jnp.asarray(ei[:, 0]), axis=0)
            xj = jnp.take(node_feats, jnp.asarray(ei[:, 1]), axis=0)
            edge_raw = jnp.concatenate([xi, xj, jnp.abs(xi - xj)], axis=1)
            # fused edge-encoder + edge-model kernel (single pass over E rows)
            edge_feats, edge_pred = edge_fused(edge_raw, self.edge_params, ED)
            # mean-aggregate incident edge features per node (segment-mean kernel,
            # each edge contributes to both endpoints)
            agg = mean_pool_by_ids(ei.T, edge_feats, n_clust, ED)        # (C, ED)

        node_pred = mlp2(jnp.concatenate([node_feats, agg], axis=1),
                         self.nm_params, 2)                              # (C, 2)
        return {'node_pred': node_pred, 'edge_pred': edge_pred,
                'clusts': clusts, 'edge_index': edge_index}

    def forward(self, data):
        point_cloud = jnp.asarray(data[0], jnp.float32)  # (N, 6): x,y,z,batch,value,id
        pc_np = np.asarray(point_cloud)                  # single host copy of input
        C = self.NUM_CLASSES

        # fused UResNet surrogate + ghost/seg argmax (one kernel, lane-dense slab)
        feats = point_cloud[:, jnp.array([0, 1, 2, 4])]
        slab = uresnet_fused(feats, self.u_params, C)    # (N, 128)
        seg = slab[:, :C]
        ghost = slab[:, C:C + 2]
        result1 = {'segmentation': [seg], 'ghost': [ghost]}

        # single small device->host transfer of mask + label (dynamic filtering
        # is inherently host-side, like the torch boolean indexing)
        ml = np.asarray(slab[:, C + 2:C + 4])            # (N, 2)
        mask_np = ml[:, 0] > 0.5
        labels_np = ml[:, 1]
        kept_idx = np.where(mask_np)[0]

        # TODO(synk): torch casts the label column with .double(); TPU keeps float32
        # (exact for small integer class ids).
        if kept_idx.shape[0] == 0:
            result2 = {'node_pred': jnp.zeros((0, 2), jnp.float32),
                       'edge_pred': jnp.zeros((0, 2), jnp.float32),
                       'clusts': [], 'edge_index': np.zeros((0, 2), np.int64)}
        else:
            kept_batch = pc_np[kept_idx, 3]
            kept_label = labels_np[kept_idx]
            result2 = self._chain(point_cloud, kept_idx, kept_batch, kept_label)

        result = {}
        result.update(result1)
        result.update(result2)
        return result


if __name__ == "__main__":
    key = jax.random.PRNGKey(0)
    k_model, k_pts, k_val, k_id = jax.random.split(key, 4)

    N = 64
    coords = jax.random.uniform(k_pts, (N, 3), jnp.float32, 0.0, 16.0)
    batch = jnp.concatenate([jnp.zeros((N // 2, 1)), jnp.ones((N - N // 2, 1))], axis=0)
    value = jax.random.uniform(k_val, (N, 1), jnp.float32, 0.0, 1.0)
    clust_id = jax.random.randint(k_id, (N, 1), 0, 4).astype(jnp.float32)
    point_cloud = jnp.concatenate(
        [coords, batch.astype(jnp.float32), value, clust_id], axis=1)  # (N, 6)

    model = GhostClustFullGNN(k_model, features=1)
    result = model.forward((point_cloud,))

    jax.block_until_ready(result['segmentation'][0])
    jax.block_until_ready(result['ghost'][0])
    jax.block_until_ready(result['node_pred'])
    jax.block_until_ready(result['edge_pred'])
    print("KERNEL_OK")
</pallas_src>

<mosaic_0001>
module attributes {stable_mosaic.version = 11 : i64} {
  func.func @_uresnet_argmax_kernel(%arg0: i32, %arg1: memref<64x128xf32, #tpu.memory_space<vmem>>, %arg2: memref<128x128xbf16, #tpu.memory_space<vmem>>, %arg3: memref<1x128xf32, #tpu.memory_space<vmem>>, %arg4: memref<128x128xbf16, #tpu.memory_space<vmem>>, %arg5: memref<1x128xf32, #tpu.memory_space<vmem>>, %arg6: memref<64x128xf32, #tpu.memory_space<vmem>>) attributes {dimension_semantics = [#tpu.dimension_semantics<parallel>], iteration_bounds = array<i64: 1>, scalar_prefetch = 0 : i64, scratch_operands = 0 : i64, tpu.core_type = #tpu.core_type<tc>, window_params = [{transform_indices = @transform_0, window_bounds = array<i64: 64, 128>}, {pipeline_mode = #tpu.pipeline_mode<synchronous>, transform_indices = @transform_1, window_bounds = array<i64: 128, 128>}, {pipeline_mode = #tpu.pipeline_mode<synchronous>, transform_indices = @transform_2, window_bounds = array<i64: 1, 128>}, {pipeline_mode = #tpu.pipeline_mode<synchronous>, transform_indices = @transform_3, window_bounds = array<i64: 128, 128>}, {pipeline_mode = #tpu.pipeline_mode<synchronous>, transform_indices = @transform_4, window_bounds = array<i64: 1, 128>}, {transform_indices = @transform_5, window_bounds = array<i64: 64, 128>}]} {
    %c0 = arith.constant 0 : index
    %c0_0 = arith.constant 0 : index
    %0 = vector.load %arg1[%c0, %c0_0] : memref<64x128xf32, #tpu.memory_space<vmem>>, vector<64x128xf32>
    %1 = arith.truncf %0 : vector<64x128xf32> to vector<64x128xbf16>
    %c0_1 = arith.constant 0 : index
    %c0_2 = arith.constant 0 : index
    %2 = vector.load %arg2[%c0_1, %c0_2] : memref<128x128xbf16, #tpu.memory_space<vmem>>, vector<128x128xbf16>
    %cst = arith.constant dense<0.000000e+00> : vector<64x128xf32>
    %3 = tpu.matmul %1, %2, %cst {dimension_numbers = #tpu.dot_dimension_numbers<[1], [0], [0], [1], [0, 0, 1, 1], [], []>} : vector<64x128xbf16>, vector<128x128xbf16>, vector<64x128xf32> -> vector<64x128xf32>
    %c0_3 = arith.constant 0 : index
    %c0_4 = arith.constant 0 : index
    %4 = vector.load %arg3[%c0_3, %c0_4] : memref<1x128xf32, #tpu.memory_space<vmem>>, vector<1x128xf32>
    %5 = vector.broadcast %4 : vector<1x128xf32> to vector<64x128xf32>
    %6 = arith.addf %3, %5 : vector<64x128xf32>
    %cst_5 = arith.constant 0.000000e+00 : f32
    %7 = vector.broadcast %cst_5 : f32 to vector<64x128xf32>
    %8 = arith.maximumf %6, %7 : vector<64x128xf32>
    %9 = arith.truncf %8 : vector<64x128xf32> to vector<64x128xbf16>
    %c0_6 = arith.constant 0 : index
    %c0_7 = arith.constant 0 : index
    %10 = vector.load %arg4[%c0_6, %c0_7] : memref<128x128xbf16, #tpu.memory_space<vmem>>, vector<128x128xbf16>
    %cst_8 = arith.constant dense<0.000000e+00> : vector<64x128xf32>
    %11 = tpu.matmul %9, %10, %cst_8 {dimension_numbers = #tpu.dot_dimension_numbers<[1], [0], [0], [1], [0, 0, 1, 1], [], []>} : vector<64x128xbf16>, vector<128x128xbf16>, vector<64x128xf32> -> vector<64x128xf32>
    %c0_9 = arith.constant 0 : index
    %c0_10 = arith.constant 0 : index
    %12 = vector.load %arg5[%c0_9, %c0_10] : memref<1x128xf32, #tpu.memory_space<vmem>>, vector<1x128xf32>
    %13 = vector.broadcast %12 : vector<1x128xf32> to vector<64x128xf32>
    %14 = arith.addf %11, %13 : vector<64x128xf32>
    %15 = tpu.iota {dimensions = array<i32: 1>} : vector<64x128xi32>
    %c5_i32 = arith.constant 5 : i32
    %16 = vector.broadcast %c5_i32 : i32 to vector<64x128xi32>
    %17 = arith.cmpi slt, %15, %16 : vector<64x128xi32>
    %cst_11 = arith.constant -3.000000e+38 : f32
    %18 = vector.broadcast %cst_11 : f32 to vector<64x128xf32>
    %19 = arith.select %17, %14, %18 : vector<64x128xi1>, vector<64x128xf32>
    %cst_12 = arith.constant dense<0xFF800000> : vector<64xf32>
    %20 = vector.multi_reduction <maximumf>, %19, %cst_12 [1] : vector<64x128xf32> to vector<64xf32>
    %21 = vector.shape_cast %20 : vector<64xf32> to vector<64x1xf32>
    %22 = vector.broadcast %21 : vector<64x1xf32> to vector<64x128xf32>
    %23 = arith.cmpf oge, %19, %22 : vector<64x128xf32>
    %c128_i32 = arith.constant 128 : i32
    %24 = vector.broadcast %c128_i32 : i32 to vector<64x128xi32>
    %25 = arith.select %23, %15, %24 : vector<64x128xi1>, vector<64x128xi32>
    %cst_13 = arith.constant dense<2147483647> : vector<64xi32>
    %26 = vector.multi_reduction <minsi>, %25, %cst_13 [1] : vector<64x128xi32> to vector<64xi32>
    %27 = vector.shape_cast %26 : vector<64xi32> to vector<64x1xi32>
    %28 = arith.sitofp %27 : vector<64x1xi32> to vector<64x1xf32>
    %c5_i32_14 = arith.constant 5 : i32
    %29 = vector.broadcast %c5_i32_14 : i32 to vector<64x128xi32>
    %30 = arith.cmpi eq, %15, %29 : vector<64x128xi32>
    %cst_15 = arith.constant -3.000000e+38 : f32
    %31 = vector.broadcast %cst_15 : f32 to vector<64x128xf32>
    %32 = arith.select %30, %14, %31 : vector<64x128xi1>, vector<64x128xf32>
    %cst_16 = arith.constant dense<0xFF800000> : vector<64xf32>
    %33 = vector.multi_reduction <maximumf>, %32, %cst_16 [1] : vector<64x128xf32> to vector<64xf32>
    %34 = vector.shape_cast %33 : vector<64xf32> to vector<64x1xf32>
    %c6_i32 = arith.constant 6 : i32
    %35 = vector.broadcast %c6_i32 : i32 to vector<64x128xi32>
    %36 = arith.cmpi eq, %15, %35 : vector<64x128xi32>
    %cst_17 = arith.constant -3.000000e+38 : f32
    %37 = vector.broadcast %cst_17 : f32 to vector<64x128xf32>
    %38 = arith.select %36, %14, %37 : vector<64x128xi1>, vector<64x128xf32>
    %cst_18 = arith.constant dense<0xFF800000> : vector<64xf32>
    %39 = vector.multi_reduction <maximumf>, %38, %cst_18 [1] : vector<64x128xf32> to vector<64xf32>
    %40 = vector.shape_cast %39 : vector<64xf32> to vector<64x1xf32>
    %41 = arith.cmpf oge, %34, %40 : vector<64x1xf32>
    %42 = arith.extui %41 : vector<64x1xi1> to vector<64x1xi32>
    %43 = arith.sitofp %42 : vector<64x1xi32> to vector<64x1xf32>
    %c7_i32 = arith.constant 7 : i32
    %44 = vector.broadcast %c7_i32 : i32 to vector<64x128xi32>
    %45 = arith.cmpi eq, %15, %44 : vector<64x128xi32>
    %cst_19 = arith.constant 0.000000e+00 : f32
    %46 = vector.shape_cast %43 : vector<64x1xf32> to vector<64x1xf32>
    %47 = vector.broadcast %46 : vector<64x1xf32> to vector<64x128xf32>
    %48 = vector.broadcast %cst_19 : f32 to vector<64x128xf32>
    %49 = arith.select %45, %47, %48 : vector<64x128xi1>, vector<64x128xf32>
    %c8_i32 = arith.constant 8 : i32
    %50 = vector.broadcast %c8_i32 : i32 to vector<64x128xi32>
    %51 = arith.cmpi eq, %15, %50 : vector<64x128xi32>
    %cst_20 = arith.constant 0.000000e+00 : f32
    %52 = vector.shape_cast %28 : vector<64x1xf32> to vector<64x1xf32>
    %53 = vector.broadcast %52 : vector<64x1xf32> to vector<64x128xf32>
    %54 = vector.broadcast %cst_20 : f32 to vector<64x128xf32>
    %55 = arith.select %51, %53, %54 : vector<64x128xi1>, vector<64x128xf32>
    %56 = arith.addf %49, %55 : vector<64x128xf32>
    %57 = arith.addf %14, %56 : vector<64x128xf32>
    %c0_21 = arith.constant 0 : index
    %c0_22 = arith.constant 0 : index
    %58 = vector.load %arg6[%c0_21, %c0_22] : memref<64x128xf32, #tpu.memory_space<vmem>>, vector<64x128xf32>
    tpu.vector_store %arg6[%c0_21, %c0_22], %57 {strides = array<i32>} : memref<64x128xf32, #tpu.memory_space<vmem>>, vector<64x128xf32>,
    return
  }
  func.func @transform_0(%arg0: i32) -> (i32, i32) {
    %c0_i32 = arith.constant 0 : i32
    %c0_i32_0 = arith.constant 0 : i32
    return %arg0, %c0_i32 : i32, i32
  }
  func.func @transform_1(%arg0: i32) -> (i32, i32) {
    %c0_i32 = arith.constant 0 : i32
    %c0_i32_0 = arith.constant 0 : i32
    %c0_i32_1 = arith.constant 0 : i32
    return %c0_i32, %c0_i32_0 : i32, i32
  }
  func.func @transform_2(%arg0: i32) -> (i32, i32) {
    %c0_i32 = arith.constant 0 : i32
    %c0_i32_0 = arith.constant 0 : i32
    %c0_i32_1 = arith.constant 0 : i32
    return %c0_i32, %c0_i32_0 : i32, i32
  }
  func.func @transform_3(%arg0: i32) -> (i32, i32) {
    %c0_i32 = arith.constant 0 : i32
    %c0_i32_0 = arith.constant 0 : i32
    %c0_i32_1 = arith.constant 0 : i32
    return %c0_i32, %c0_i32_0 : i32, i32
  }
  func.func @transform_4(%arg0: i32) -> (i32, i32) {
    %c0_i32 = arith.constant 0 : i32
    %c0_i32_0 = arith.constant 0 : i32
    %c0_i32_1 = arith.constant 0 : i32
    return %c0_i32, %c0_i32_0 : i32, i32
  }
  func.func @transform_5(%arg0: i32) -> (i32, i32) {
    %c0_i32 = arith.constant 0 : i32
    %c0_i32_0 = arith.constant 0 : i32
    return %arg0, %c0_i32 : i32, i32
  }
}

</mosaic_0001>

<llo_original>
// kernel: tpu_custom_call.1
$region0: #{tpu_custom_call.1}
  #allocation0 [shape = 'u32[]', space=smem, size = 0x4, offset = 0x4, fixed_abs, tag = 'smem constant byte address 0x4 - core index']
  #allocation1 [shape = 'u32[72,128]{1,0:T(1,128)}', space=vmem, size = 0x9000, scoped, tag = 'internal scratch']
  %s0 = inlined_call_operand.hbm [shape: f32[64,128], index: 0, kind: input, shape index: {}]
  %s1 = inlined_call_operand.hbm [shape: bf16[128,128], index: 1, kind: input, shape index: {}]
  %s2 = inlined_call_operand.vmem [shape: f32[1,128], index: 2, kind: input, shape index: {}]
  %s3 = inlined_call_operand.hbm [shape: bf16[128,128], index: 3, kind: input, shape index: {}]
  %s4 = inlined_call_operand.vmem [shape: f32[1,128], index: 4, kind: input, shape index: {}]
  %s5 = inlined_call_operand.hbm [shape: f32[64,128], index: 5, kind: output, shape index: {}]
  %s6 = sld [smem:[#allocation0]]
  $region42: #{tpu_custom_call.1} parent=0
    _
  %s8 = ssub.s32 1, %s6
  %s9 = scalar_select 0, %s8, %s6
  $region1: #{tpu_custom_call.1} parent=0
    #allocation2 [shape = 'u8[32768]{0}', space=vmem, size = 0x8000, scoped, tag = 'input window, operand 0, single buffered']
    #allocation3 [shape = 's32[1]{0}', space=sflag, size = 0x4, scoped, tag = 'scoped memory for tpu_custom_call.1']
    #allocation4 [shape = 's32[1]{0}', space=sflag, size = 0x4, scoped, tag = 'scoped memory for tpu_custom_call.1']
    #allocation5 [shape = 'u8[32768]{0}', space=vmem, size = 0x8000, scoped, tag = 'input window, operand 1, single buffered']
    #allocation6 [shape = 's32[1]{0}', space=sflag, size = 0x4, scoped, tag = 'scoped memory for tpu_custom_call.1']
    #allocation7 [shape = 'u8[32768]{0}', space=vmem, size = 0x8000, scoped, tag = 'input window, operand 3, single buffered']
    #allocation8 [shape = 'u8[32768]{0}', space=vmem, size = 0x8000, scoped, tag = 'output window, operand 0, single buffered']
    %10 = vsyncpa [#allocation3], 0
    %11 = vsyncpa [#allocation6], 0
    %12 = vsyncpa [#allocation4], 0
    // Predicated region
    $region2: #{tpu_custom_call.1} parent=1 // pred_check
      _
    $region3: #{tpu_custom_call.1} parent=1 // pred_check_branch
      %14 = sbr.rel (0) target = $region5
    $region4: #{tpu_custom_call.1} parent=1 // pred_region
      %16 = vsyncadd [#allocation3], 0
      %s17 = sshll.u32 %s0, 4
      %s18 = int_to_ptr.hbm [resolvable:$true] %s17
      %s19 = sshll.u32 [#allocation2], 4
      %s20 = int_to_ptr.vmem [resolvable:$true] %s19
      %25 = dma.hbm_to_vmem [thread:$0]  %s18, 1024, %s20, [#allocation3], 128, 128, 8
    $region5: #{tpu_custom_call.1} parent=1 // pred_fallthru
      _
    // Predicated region
    $region6: #{tpu_custom_call.1} parent=1 // pred_check
      _
    $region7: #{tpu_custom_call.1} parent=1 // pred_check_branch
      %27 = sbr.rel (0) target = $region9
    $region8: #{tpu_custom_call.1} parent=1 // pred_region
      %29 = vsyncadd [#allocation6], 0
      %s30 = sshll.u32 %s1, 4
      %s31 = int_to_ptr.hbm [resolvable:$true] %s30
      %s32 = sshll.u32 [#allocation5], 4
      %s33 = int_to_ptr.vmem [resolvable:$true] %s32
      %38 = dma.hbm_to_vmem [thread:$0]  %s31, 1024, %s33, [#allocation6], 64, 64, 4
    $region9: #{tpu_custom_call.1} parent=1 // pred_fallthru
      _
    // Predicated region
    $region10: #{tpu_custom_call.1} parent=1 // pred_check
      _
    $region11: #{tpu_custom_call.1} parent=1 // pred_check_branch
      %40 = sbr.rel (0) target = $region13
    $region12: #{tpu_custom_call.1} parent=1 // pred_region
      _
    $region13: #{tpu_custom_call.1} parent=1 // pred_fallthru
      _
    // Predicated region
    $region14: #{tpu_custom_call.1} parent=1 // pred_check
      _
    $region15: #{tpu_custom_call.1} parent=1 // pred_check_branch
      %42 = sbr.rel (0) target = $region17
    $region16: #{tpu_custom_call.1} parent=1 // pred_region
      %44 = vsyncadd [#allocation6], 0
      %s45 = sshll.u32 %s3, 4
      %s46 = int_to_ptr.hbm [resolvable:$true] %s45
      %s47 = sshll.u32 [#allocation7], 4
      %s48 = int_to_ptr.vmem [resolvable:$true] %s47
      %53 = dma.hbm_to_vmem [thread:$0]  %s46, 1024, %s48, [#allocation6], 64, 64, 4
    $region17: #{tpu_custom_call.1} parent=1 // pred_fallthru
      _
    // Predicated region
    $region18: #{tpu_custom_call.1} parent=1 // pred_check
      _
    $region19: #{tpu_custom_call.1} parent=1 // pred_check_branch
      %55 = sbr.rel (0) target = $region21
    $region20: #{tpu_custom_call.1} parent=1 // pred_region
      _
    $region21: #{tpu_custom_call.1} parent=1 // pred_fallthru
      _
    // Predicated region
    $region22: #{tpu_custom_call.1} parent=1 // pred_check
      _
    $region23: #{tpu_custom_call.1} parent=1 // pred_check_branch
      %57 = sbr.rel (0) target = $region25
    $region24: #{tpu_custom_call.1} parent=1 // pred_region
      %59 = dma.done [#allocation3], 1024
    $region25: #{tpu_custom_call.1} parent=1 // pred_fallthru
      _
    // Predicated region
    $region26: #{tpu_custom_call.1} parent=1 // pred_check
      _
    $region27: #{tpu_custom_call.1} parent=1 // pred_check_branch
      %61 = sbr.rel (0) target = $region29
    $region28: #{tpu_custom_call.1} parent=1 // pred_region
      %63 = dma.done [#allocation6], 1024
    $region29: #{tpu_custom_call.1} parent=1 // pred_fallthru
      _
    // Predicated region
    $region30: #{tpu_custom_call.1} parent=1 // pred_check
      _
    $region31: #{tpu_custom_call.1} parent=1 // pred_check_branch
      %65 = sbr.rel (0) target = $region33
    $region32: #{tpu_custom_call.1} parent=1 // pred_region
      %67 = dma.done [#allocation6], 1024
    $region33: #{tpu_custom_call.1} parent=1 // pred_fallthru
      _
    %v68 = vld [vmem:[#allocation2] sm:$0xff]
    %v69 = vld [vmem:[#allocation2 + $0x8] sm:$0xff]
    %v70 = vld [vmem:[#allocation2 + $0x10] sm:$0xff]
    %v71 = vld [vmem:[#allocation2 + $0x18] sm:$0xff]
    %v72 = vld [vmem:[#allocation2 + $0x20] sm:$0xff]
    %v73 = vld [vmem:[#allocation2 + $0x28] sm:$0xff]
    %v74 = vld [vmem:[#allocation2 + $0x30] sm:$0xff]
    %v75 = vld [vmem:[#allocation2 + $0x38] sm:$0xff]
    %v76 = vpack.c.bf16 %v69, %v68
    %v77 = vpack.c.bf16 %v71, %v70
    %v78 = vpack.c.bf16 %v73, %v72
    %v79 = vpack.c.bf16 %v75, %v74
    %v80 = vld [vmem:[#allocation5] sm:$0xf]
    %v81 = vld [vmem:[#allocation5 + $0x4] sm:$0xf]
    %v82 = vld [vmem:[#allocation5 + $0x8] sm:$0xf]
    %v83 = vld [vmem:[#allocation5 + $0xc] sm:$0xf]
    %v84 = vld [vmem:[#allocation5 + $0x10] sm:$0xf]
    %v85 = vld [vmem:[#allocation5 + $0x14] sm:$0xf]
    %v86 = vld [vmem:[#allocation5 + $0x18] sm:$0xf]
    %v87 = vld [vmem:[#allocation5 + $0x1c] sm:$0xf]
    %v88 = vld [vmem:[#allocation5 + $0x20] sm:$0xf]
    %v89 = vld [vmem:[#allocation5 + $0x24] sm:$0xf]
    %v90 = vld [vmem:[#allocation5 + $0x28] sm:$0xf]
    %v91 = vld [vmem:[#allocation5 + $0x2c] sm:$0xf]
    %v92 = vld [vmem:[#allocation5 + $0x30] sm:$0xf]
    %v93 = vld [vmem:[#allocation5 + $0x34] sm:$0xf]
    %v94 = vld [vmem:[#allocation5 + $0x38] sm:$0xf]
    %v95 = vld [vmem:[#allocation5 + $0x3c] sm:$0xf]
    %v96 = vld [vmem:[%s2] sm:$0x1]
    %v98 = vperm.slane %v96, 0
    %v116 = vunpack.c.l.b16 %v80
    %v117 = vunpack.c.l.b16 %v81
    %v118 = vunpack.c.l.b16 %v82
    %v119 = vunpack.c.l.b16 %v83
    %v120 = vunpack.c.l.b16 %v84
    %v121 = vunpack.c.l.b16 %v85
    %v122 = vunpack.c.l.b16 %v86
    %v123 = vunpack.c.l.b16 %v87
    %v124 = vunpack.c.l.b16 %v88
    %v125 = vunpack.c.l.b16 %v89
    %v126 = vunpack.c.l.b16 %v90
    %v127 = vunpack.c.l.b16 %v91
    %v128 = vunpack.c.l.b16 %v92
    %v129 = vunpack.c.l.b16 %v93
    %v130 = vunpack.c.l.b16 %v94
    %v131 = vunpack.c.l.b16 %v95
    %v132 = vpack.c.b16 %v117, %v116
    %v133 = vpack.c.b16 %v119, %v118
    %v134 = vpack.c.b16 %v121, %v120
    %v135 = vpack.c.b16 %v123, %v122
    %v136 = vpack.c.b16 %v125, %v124
    %v137 = vpack.c.b16 %v127, %v126
    %v138 = vpack.c.b16 %v129, %v128
    %v139 = vpack.c.b16 %v131, %v130
    %148 = vmatpush.bf16.msra.mxu0 %v139
    %149 = vmatpush.bf16.msra.mxu0 %v138
    %150 = vmatpush.bf16.msra.mxu0 %v137
    %151 = vmatpush.bf16.msra.mxu0 %v136
    %152 = vmatpush.bf16.msra.mxu0 %v135
    %153 = vmatpush.bf16.msra.mxu0 %v134
    %154 = vmatpush.bf16.msra.mxu0 %v133
    %155 = vmatpush.bf16.msra.mxu0 %v132
    %156 = vmatmul.bf16.gmra.mxu0 %v76
    %v157 = vpop.f32.mrf.mxu0
    %v158 = vadd.f32 %v98, %v157
    %v159 = vpop.f32.mrf.mxu0
    %v160 = vadd.f32 %v98, %v159
    %161 = vmatmul.bf16.gmra.mxu0 %v77
    %v162 = vpop.f32.mrf.mxu0
    %v163 = vadd.f32 %v98, %v162
    %v164 = vpop.f32.mrf.mxu0
    %v165 = vadd.f32 %v98, %v164
    %166 = vmatmul.bf16.gmra.mxu0 %v78
    %v167 = vpop.f32.mrf.mxu0
    %v168 = vadd.f32 %v98, %v167
    %v169 = vpop.f32.mrf.mxu0
    %v170 = vadd.f32 %v98, %v169
    %171 = vmatmul.bf16.gmra.mxu0 %v79
    %v172 = vpop.f32.mrf.mxu0
    %v173 = vadd.f32 %v98, %v172
    %v174 = vpop.f32.mrf.mxu0
    %v175 = vadd.f32 %v98, %v174
    %176 = vdwg.mxu0
    %v177 = vmax.f32 %v158, 0.0
    %v178 = vmax.f32 %v160, 0.0
    %v179 = vmax.f32 %v163, 0.0
    %v180 = vmax.f32 %v165, 0.0
    %v181 = vmax.f32 %v168, 0.0
    %v182 = vmax.f32 %v170, 0.0
    %v183 = vmax.f32 %v173, 0.0
    %v184 = vmax.f32 %v175, 0.0
    %v185 = vpack.c.bf16 %v178, %v177
    %v186 = vpack.c.bf16 %v180, %v179
    %v187 = vpack.c.bf16 %v182, %v181
    %v188 = vpack.c.bf16 %v184, %v183
    %v189 = vld [vmem:[#allocation7] sm:$0xf]
    %v190 = vld [vmem:[#allocation7 + $0x4] sm:$0xf]
    %v191 = vld [vmem:[#allocation7 + $0x8] sm:$0xf]
    %v192 = vld [vmem:[#allocation7 + $0xc] sm:$0xf]
    %v193 = vld [vmem:[#allocation7 + $0x10] sm:$0xf]
    %v194 = vld [vmem:[#allocation7 + $0x14] sm:$0xf]
    %v195 = vld [vmem:[#allocation7 + $0x18] sm:$0xf]
    %v196 = vld [vmem:[#allocation7 + $0x1c] sm:$0xf]
    %v197 = vld [vmem:[#allocation7 + $0x20] sm:$0xf]
    %v198 = vld [vmem:[#allocation7 + $0x24] sm:$0xf]
    %v199 = vld [vmem:[#allocation7 + $0x28] sm:$0xf]
    %v200 = vld [vmem:[#allocation7 + $0x2c] sm:$0xf]
    %v201 = vld [vmem:[#allocation7 + $0x30] sm:$0xf]
    %v202 = vld [vmem:[#allocation7 + $0x34] sm:$0xf]
    %v203 = vld [vmem:[#allocation7 + $0x38] sm:$0xf]
    %v204 = vld [vmem:[#allocation7 + $0x3c] sm:$0xf]
    %v205 = vld [vmem:[%s4] sm:$0x1]
    %v207 = vperm.slane %v205, 0
    %v225 = vunpack.c.l.b16 %v189
    %v226 = vunpack.c.l.b16 %v190
    %v227 = vunpack.c.l.b16 %v191
    %v228 = vunpack.c.l.b16 %v192
    %v229 = vunpack.c.l.b16 %v193
    %v230 = vunpack.c.l.b16 %v194
    %v231 = vunpack.c.l.b16 %v195
    %v232 = vunpack.c.l.b16 %v196
    %v233 = vunpack.c.l.b16 %v197
    %v234 = vunpack.c.l.b16 %v198
    %v235 = vunpack.c.l.b16 %v199
    %v236 = vunpack.c.l.b16 %v200
    %v237 = vunpack.c.l.b16 %v201
    %v238 = vunpack.c.l.b16 %v202
    %v239 = vunpack.c.l.b16 %v203
    %v240 = vunpack.c.l.b16 %v204
    %v241 = vpack.c.b16 %v226, %v225
    %v242 = vpack.c.b16 %v228, %v227
    %v243 = vpack.c.b16 %v230, %v229
    %v244 = vpack.c.b16 %v232, %v231
    %v245 = vpack.c.b16 %v234, %v233
    %v246 = vpack.c.b16 %v236, %v235
    %v247 = vpack.c.b16 %v238, %v237
    %v248 = vpack.c.b16 %v240, %v239
    %257 = vmatpush.bf16.msra.mxu0 %v248
    %258 = vmatpush.bf16.msra.mxu0 %v247
    %259 = vmatpush.bf16.msra.mxu0 %v246
    %260 = vmatpush.bf16.msra.mxu0 %v245
    %261 = vmatpush.bf16.msra.mxu0 %v244
    %262 = vmatpush.bf16.msra.mxu0 %v243
    %263 = vmatpush.bf16.msra.mxu0 %v242
    %264 = vmatpush.bf16.msra.mxu0 %v241
    %265 = vmatmul.bf16.gmra.mxu0 %v185
    %v266 = vpop.f32.mrf.mxu0
    %v267 = vadd.f32 %v207, %v266
    %v268 = vpop.f32.mrf.mxu0
    %v269 = vadd.f32 %v207, %v268
    %270 = vmatmul.bf16.gmra.mxu0 %v186
    %v271 = vpop.f32.mrf.mxu0
    %v272 = vadd.f32 %v207, %v271
    %v273 = vpop.f32.mrf.mxu0
    %v274 = vadd.f32 %v207, %v273
    %275 = vmatmul.bf16.gmra.mxu0 %v187
    %v276 = vpop.f32.mrf.mxu0
    %v277 = vadd.f32 %v207, %v276
    %v278 = vpop.f32.mrf.mxu0
    %v279 = vadd.f32 %v207, %v278
    %280 = vmatmul.bf16.gmra.mxu0 %v188
    %v281 = vpop.f32.mrf.mxu0
    %v282 = vadd.f32 %v207, %v281
    %v283 = vpop.f32.mrf.mxu0
    %v284 = vadd.f32 %v207, %v283
    %285 = vdwg.mxu0
    %v286 = vlaneseq
    %v287 = vand.u32 %v286, 127
    %vm288 = vcmp.lt.s32.totalorder %v287, 5
    %v289 = vsel %vm288, %v267, -3e+38
    %v290 = vsel %vm288, %v269, -3e+38
    %v291 = vsel %vm288, %v272, -3e+38
    %v292 = vsel %vm288, %v274, -3e+38
    %v293 = vsel %vm288, %v277, -3e+38
    %v294 = vsel %vm288, %v279, -3e+38
    %v295 = vsel %vm288, %v282, -3e+38
    %v296 = vsel %vm288, %v284, -3e+38
    %297 = vmax.xlane.f32.xlu0 %v289
    %v298 = vpop.xlane.xlu0 %297
    %299 = vmax.xlane.f32.xlu0 %v290
    %v300 = vpop.xlane.xlu0 %299
    %301 = vmax.xlane.f32.xlu0 %v291
    %v302 = vpop.xlane.xlu0 %301
    %303 = vmax.xlane.f32.xlu0 %v292
    %v304 = vpop.xlane.xlu0 %303
    %305 = vmax.xlane.f32.xlu0 %v293
    %v306 = vpop.xlane.xlu0 %305
    %307 = vmax.xlane.f32.xlu0 %v294
    %v308 = vpop.xlane.xlu0 %307
    %309 = vmax.xlane.f32.xlu0 %v295
    %v310 = vpop.xlane.xlu0 %309
    %311 = vmax.xlane.f32.xlu0 %v296
    %v312 = vpop.xlane.xlu0 %311
    %vm313 = vcmp.ge.f32.partialorder %v289, %v298
    %vm314 = vcmp.ge.f32.partialorder %v290, %v300
    %vm315 = vcmp.ge.f32.partialorder %v291, %v302
    %vm316 = vcmp.ge.f32.partialorder %v292, %v304
    %vm317 = vcmp.ge.f32.partialorder %v293, %v306
    %vm318 = vcmp.ge.f32.partialorder %v294, %v308
    %vm319 = vcmp.ge.f32.partialorder %v295, %v310
    %vm320 = vcmp.ge.f32.partialorder %v296, %v312
    %v321 = vsel %vm313, %v287, 128
    %v322 = vsel %vm314, %v287, 128
    %v323 = vsel %vm315, %v287, 128
    %v324 = vsel %vm316, %v287, 128
    %v325 = vsel %vm317, %v287, 128
    %v326 = vsel %vm318, %v287, 128
    %v327 = vsel %vm319, %v287, 128
    %v328 = vsel %vm320, %v287, 128
    %v329 = vand.u32 %v321, 65535
    %v330 = vshra.s32 %v321, 16
    %v331 = vcvt.s32.f32 %v329
    %v332 = vcvt.s32.f32 %v330
    %333 = vmin.xlane.f32.xlu0 %v332
    %v334 = vpop.xlane.xlu0 %333
    %vm335 = vcmp.eq.f32.partialorder %v332, %v334
    %v336 = vsel %vm335, %v331, inf
    %337 = vmin.xlane.f32.xlu0 %v336
    %v338 = vpop.xlane.xlu0 %337
    %v339 = vcvt.f32.s32 %v338
    %v340 = vcvt.f32.s32 %v334
    %v341 = vshll.u32 %v340, 16
    %v342 = vadd.s32 %v341, %v339
    %v343 = vand.u32 %v322, 65535
    %v344 = vshra.s32 %v322, 16
    %v345 = vcvt.s32.f32 %v343
    %v346 = vcvt.s32.f32 %v344
    %347 = vmin.xlane.f32.xlu0 %v346
    %v348 = vpop.xlane.xlu0 %347
    %vm349 = vcmp.eq.f32.partialorder %v346, %v348
    %v350 = vsel %vm349, %v345, inf
    %351 = vmin.xlane.f32.xlu0 %v350
    %v352 = vpop.xlane.xlu0 %351
    %v353 = vcvt.f32.s32 %v352
    %v354 = vcvt.f32.s32 %v348
    %v355 = vshll.u32 %v354, 16
    %v356 = vadd.s32 %v355, %v353
    %v357 = vand.u32 %v323, 65535
    %v358 = vshra.s32 %v323, 16
    %v359 = vcvt.s32.f32 %v357
    %v360 = vcvt.s32.f32 %v358
    %361 = vmin.xlane.f32.xlu0 %v360
    %v362 = vpop.xlane.xlu0 %361
    %vm363 = vcmp.eq.f32.partialorder %v360, %v362
    %v364 = vsel %vm363, %v359, inf
    %365 = vmin.xlane.f32.xlu0 %v364
    %v366 = vpop.xlane.xlu0 %365
    %v367 = vcvt.f32.s32 %v366
    %v368 = vcvt.f32.s32 %v362
    %v369 = vshll.u32 %v368, 16
    %v370 = vadd.s32 %v369, %v367
    %v371 = vand.u32 %v324, 65535
    %v372 = vshra.s32 %v324, 16
    %v373 = vcvt.s32.f32 %v371
    %v374 = vcvt.s32.f32 %v372
    %375 = vmin.xlane.f32.xlu0 %v374
    %v376 = vpop.xlane.xlu0 %375
    %vm377 = vcmp.eq.f32.partialorder %v374, %v376
    %v378 = vsel %vm377, %v373, inf
    %379 = vmin.xlane.f32.xlu0 %v378
    %v380 = vpop.xlane.xlu0 %379
    %v381 = vcvt.f32.s32 %v380
    %v382 = vcvt.f32.s32 %v376
    %v383 = vshll.u32 %v382, 16
    %v384 = vadd.s32 %v383, %v381
    %v385 = vand.u32 %v325, 65535
    %v386 = vshra.s32 %v325, 16
    %v387 = vcvt.s32.f32 %v385
    %v388 = vcvt.s32.f32 %v386
    %389 = vmin.xlane.f32.xlu0 %v388
    %v390 = vpop.xlane.xlu0 %389
    %vm391 = vcmp.eq.f32.partialorder %v388, %v390
    %v392 = vsel %vm391, %v387, inf
    %393 = vmin.xlane.f32.xlu0 %v392
    %v394 = vpop.xlane.xlu0 %393
    %v395 = vcvt.f32.s32 %v394
    %v396 = vcvt.f32.s32 %v390
    %v397 = vshll.u32 %v396, 16
    %v398 = vadd.s32 %v397, %v395
    %v399 = vand.u32 %v326, 65535
    %v400 = vshra.s32 %v326, 16
    %v401 = vcvt.s32.f32 %v399
    %v402 = vcvt.s32.f32 %v400
    %403 = vmin.xlane.f32.xlu0 %v402
    %v404 = vpop.xlane.xlu0 %403
    %vm405 = vcmp.eq.f32.partialorder %v402, %v404
    %v406 = vsel %vm405, %v401, inf
    %407 = vmin.xlane.f32.xlu0 %v406
    %v408 = vpop.xlane.xlu0 %407
    %v409 = vcvt.f32.s32 %v408
    %v410 = vcvt.f32.s32 %v404
    %v411 = vshll.u32 %v410, 16
    %v412 = vadd.s32 %v411, %v409
    %v413 = vand.u32 %v327, 65535
    %v414 = vshra.s32 %v327, 16
    %v415 = vcvt.s32.f32 %v413
    %v416 = vcvt.s32.f32 %v414
    %417 = vmin.xlane.f32.xlu0 %v416
    %v418 = vpop.xlane.xlu0 %417
    %vm419 = vcmp.eq.f32.partialorder %v416, %v418
    %v420 = vsel %vm419, %v415, inf
    %421 = vmin.xlane.f32.xlu0 %v420
    %v422 = vpop.xlane.xlu0 %421
    %v423 = vcvt.f32.s32 %v422
    %v424 = vcvt.f32.s32 %v418
    %v425 = vshll.u32 %v424, 16
    %v426 = vadd.s32 %v425, %v423
    %v427 = vand.u32 %v328, 65535
    %v428 = vshra.s32 %v328, 16
    %v429 = vcvt.s32.f32 %v427
    %v430 = vcvt.s32.f32 %v428
    %431 = vmin.xlane.f32.xlu0 %v430
    %v432 = vpop.xlane.xlu0 %431
    %vm433 = vcmp.eq.f32.partialorder %v430, %v432
    %v434 = vsel %vm433, %v429, inf
    %435 = vmin.xlane.f32.xlu0 %v434
    %v436 = vpop.xlane.xlu0 %435
    %v437 = vcvt.f32.s32 %v436
    %v438 = vcvt.f32.s32 %v432
    %v439 = vshll.u32 %v438, 16
    %v440 = vadd.s32 %v439, %v437
    %v441 = vcvt.s32.f32 %v342
    %v442 = vcvt.s32.f32 %v356
    %v443 = vcvt.s32.f32 %v370
    %v444 = vcvt.s32.f32 %v384
    %v445 = vcvt.s32.f32 %v398
    %v446 = vcvt.s32.f32 %v412
    %v447 = vcvt.s32.f32 %v426
    %v448 = vcvt.s32.f32 %v440
    %vm449 = vcmp.eq.s32.totalorder %v287, 5
    %v450 = vsel %vm449, %v267, -3e+38
    %v451 = vsel %vm449, %v269, -3e+38
    %v452 = vsel %vm449, %v272, -3e+38
    %v453 = vsel %vm449, %v274, -3e+38
    %v454 = vsel %vm449, %v277, -3e+38
    %v455 = vsel %vm449, %v279, -3e+38
    %v456 = vsel %vm449, %v282, -3e+38
    %v457 = vsel %vm449, %v284, -3e+38
    %458 = vmax.xlane.f32.xlu0 %v450
    %v459 = vpop.xlane.xlu0 %458
    %460 = vmax.xlane.f32.xlu0 %v451
    %v461 = vpop.xlane.xlu0 %460
    %462 = vmax.xlane.f32.xlu0 %v452
    %v463 = vpop.xlane.xlu0 %462
    %464 = vmax.xlane.f32.xlu0 %v453
    %v465 = vpop.xlane.xlu0 %464
    %466 = vmax.xlane.f32.xlu0 %v454
    %v467 = vpop.xlane.xlu0 %466
    %468 = vmax.xlane.f32.xlu0 %v455
    %v469 = vpop.xlane.xlu0 %468
    %470 = vmax.xlane.f32.xlu0 %v456
    %v471 = vpop.xlane.xlu0 %470
    %472 = vmax.xlane.f32.xlu0 %v457
    %v473 = vpop.xlane.xlu0 %472
    %vm474 = vcmp.eq.s32.totalorder %v287, 6
    %v475 = vsel %vm474, %v267, -3e+38
    %v476 = vsel %vm474, %v269, -3e+38
    %v477 = vsel %vm474, %v272, -3e+38
    %v478 = vsel %vm474, %v274, -3e+38
    %v479 = vsel %vm474, %v277, -3e+38
    %v480 = vsel %vm474, %v279, -3e+38
    %v481 = vsel %vm474, %v282, -3e+38
    %v482 = vsel %vm474, %v284, -3e+38
    %483 = vmax.xlane.f32.xlu0 %v475
    %v484 = vpop.xlane.xlu0 %483
    %485 = vmax.xlane.f32.xlu0 %v476
    %v486 = vpop.xlane.xlu0 %485
    %487 = vmax.xlane.f32.xlu0 %v477
    %v488 = vpop.xlane.xlu0 %487
    %489 = vmax.xlane.f32.xlu0 %v478
    %v490 = vpop.xlane.xlu0 %489
    %491 = vmax.xlane.f32.xlu0 %v479
    %v492 = vpop.xlane.xlu0 %491
    %493 = vmax.xlane.f32.xlu0 %v480
    %v494 = vpop.xlane.xlu0 %493
    %495 = vmax.xlane.f32.xlu0 %v481
    %v496 = vpop.xlane.xlu0 %495
    %497 = vmax.xlane.f32.xlu0 %v482
    %v498 = vpop.xlane.xlu0 %497
    %vm499 = vcmp.ge.f32.partialorder %v459, %v484
    %vm500 = vcmp.ge.f32.partialorder %v461, %v486
    %vm501 = vcmp.ge.f32.partialorder %v463, %v488
    %vm502 = vcmp.ge.f32.partialorder %v465, %v490
    %vm503 = vcmp.ge.f32.partialorder %v467, %v492
    %vm504 = vcmp.ge.f32.partialorder %v469, %v494
    %vm505 = vcmp.ge.f32.partialorder %v471, %v496
    %vm506 = vcmp.ge.f32.partialorder %v473, %v498
    %v507 = vsel %vm499, 1, 0
    %v508 = vsel %vm500, 1, 0
    %v509 = vsel %vm501, 1, 0
    %v510 = vsel %vm502, 1, 0
    %v511 = vsel %vm503, 1, 0
    %v512 = vsel %vm504, 1, 0
    %v513 = vsel %vm505, 1, 0
    %v514 = vsel %vm506, 1, 0
    %v515 = vcvt.s32.f32 %v507
    %v516 = vcvt.s32.f32 %v508
    %v517 = vcvt.s32.f32 %v509
    %v518 = vcvt.s32.f32 %v510
    %v519 = vcvt.s32.f32 %v511
    %v520 = vcvt.s32.f32 %v512
    %v521 = vcvt.s32.f32 %v513
    %v522 = vcvt.s32.f32 %v514
    %vm523 = vcmp.eq.s32.totalorder %v287, 7
    %v524 = vsel %vm523, %v515, 0.0
    %v525 = vsel %vm523, %v516, 0.0
    %v526 = vsel %vm523, %v517, 0.0
    %v527 = vsel %vm523, %v518, 0.0
    %v528 = vsel %vm523, %v519, 0.0
    %v529 = vsel %vm523, %v520, 0.0
    %v530 = vsel %vm523, %v521, 0.0
    %v531 = vsel %vm523, %v522, 0.0
    %vm532 = vcmp.eq.s32.totalorder %v287, 8
    %v533 = vsel %vm532, %v441, 0.0
    %v534 = vsel %vm532, %v442, 0.0
    %v535 = vsel %vm532, %v443, 0.0
    %v536 = vsel %vm532, %v444, 0.0
    %v537 = vsel %vm532, %v445, 0.0
    %v538 = vsel %vm532, %v446, 0.0
    %v539 = vsel %vm532, %v447, 0.0
    %v540 = vsel %vm532, %v448, 0.0
    %v541 = vadd.f32 %v524, %v533
    %v542 = vadd.f32 %v525, %v534
    %v543 = vadd.f32 %v526, %v535
    %v544 = vadd.f32 %v527, %v536
    %v545 = vadd.f32 %v528, %v537
    %v546 = vadd.f32 %v529, %v538
    %v547 = vadd.f32 %v530, %v539
    %v548 = vadd.f32 %v531, %v540
    %v549 = vadd.f32 %v267, %v541
    %v550 = vadd.f32 %v269, %v542
    %v551 = vadd.f32 %v272, %v543
    %v552 = vadd.f32 %v274, %v544
    %v553 = vadd.f32 %v277, %v545
    %v554 = vadd.f32 %v279, %v546
    %v555 = vadd.f32 %v282, %v547
    %v556 = vadd.f32 %v284, %v548
    %557 = vst [vmem:[#allocation8] sm:$0xff] %v549
    %558 = vst [vmem:[#allocation8 + $0x8] sm:$0xff] %v550
    %559 = vst [vmem:[#allocation8 + $0x10] sm:$0xff] %v551
    %560 = vst [vmem:[#allocation8 + $0x18] sm:$0xff] %v552
    %561 = vst [vmem:[#allocation8 + $0x20] sm:$0xff] %v553
    %562 = vst [vmem:[#allocation8 + $0x28] sm:$0xff] %v554
    %563 = vst [vmem:[#allocation8 + $0x30] sm:$0xff] %v555
    %564 = vst [vmem:[#allocation8 + $0x38] sm:$0xff] %v556
    // Predicated region
    $region34: #{tpu_custom_call.1} parent=1 // pred_check
      _
    $region35: #{tpu_custom_call.1} parent=1 // pred_check_branch
      %566 = sbr.rel (0) target = $region37
    $region36: #{tpu_custom_call.1} parent=1 // pred_region
      %568 = vsyncadd [#allocation4], 0
      %s569 = sshll.u32 [#allocation8], 4
      %s570 = int_to_ptr.vmem [resolvable:$true] %s569
      %s571 = sshll.u32 %s5, 4
      %s572 = int_to_ptr.hbm [resolvable:$true] %s571
      %577 = dma.vmem_to_hbm [thread:$0]  %s570, 1024, %s572, [#allocation4], 128, 128, 8
    $region37: #{tpu_custom_call.1} parent=1 // pred_fallthru
      _
    // Predicated region
    $region38: #{tpu_custom_call.1} parent=1 // pred_check
      _
    $region39: #{tpu_custom_call.1} parent=1 // pred_check_branch
      %579 = sbr.rel (0) target = $region41
    $region40: #{tpu_custom_call.1} parent=1 // pred_region
      %581 = dma.done [#allocation4], 1024
    $region41: #{tpu_custom_call.1} parent=1 // pred_fallthru
      _
    %582 = vsyncpa [#allocation3], 1
    %583 = vsyncpa [#allocation6], 1
    %584 = vsyncpa [#allocation4], 1

</llo_original>
